<compile_context>
chip_gen: v5e
topology: v5e:2x2
jax: 0.10.0
libtpu: 0.0.40
codegen_flags: <defaults>
</compile_context>

<pallas_src>
import math

import jax
import jax.numpy as jnp
from jax.experimental import pallas as pl
from jax.experimental.pallas import tpu as pltpu


_LANE = 128      # lane width: hidden-dim padding target
_SUBLANE = 8     # sublane width: batch-tile alignment target
_VMEM_BUDGET_BYTES = 48 * 1024 * 1024   # headroom under v7x's 64 MiB physical VMEM


def _round_up(n, m):
    return ((n + m - 1) // m) * m


def _device_kind():
    try:
        return jax.devices()[0].device_kind.lower()
    except Exception:
        return ""


def _default_batch_tile():
    # v5e: M=128 fills the 4x128^2 MXU at lower vreg/VMEM pressure.
    # v6e/v7x: M=256 matches the 256-wide MXU (K/N already underfill it).
    return 128 if "v5" in _device_kind() else 256


def _default_core_parallel():
    # Only v7x has 2 TensorCores per chip; CORE_PARALLEL shards the batch grid
    # axis across them.  PARALLEL is the safe choice everywhere else.
    return "v7" in _device_kind()


def _mlp_kernel(x_ref, w1_ref, b1_ref, w2_ref, b2_ref, w3_ref, b3_ref, o_ref):
    # Dropout(rate=0) == identity; no batch-norm in the non-bonus HW4 config.
    # Cast the activation operand to the weight dtype in-kernel (VPU work, no
    # extra HBM traffic); accumulate in f32; bias add / ReLU stay f32.
    x = x_ref[...].astype(w1_ref.dtype)

    # hidden layer 1: Linear + ReLU
    h = jnp.dot(x, w1_ref[...], preferred_element_type=jnp.float32) + b1_ref[...]
    h = jnp.maximum(h, 0.0)

    # hidden layer 2: Linear + ReLU
    h = jnp.dot(h.astype(w2_ref.dtype), w2_ref[...],
                preferred_element_type=jnp.float32) + b2_ref[...]
    h = jnp.maximum(h, 0.0)

    # output layer: Linear (no non-linearity)
    y = jnp.dot(h.astype(w3_ref.dtype), w3_ref[...],
                preferred_element_type=jnp.float32) + b3_ref[...]
    o_ref[...] = y.astype(o_ref.dtype)


def pad_params_for_tpu(params, compute_dtype=jnp.bfloat16):
    """Prepare MLP params for the TPU kernel.

    Only the *hidden* feature dims are zero-padded to 128 lanes (hidden
    activations never touch HBM; zero-padded weight rows/cols plus zero biases
    and relu(0)=0 keep the math exact).  The input dim (layer-1 K) and output
    dim (layer-3 N) are left at their true sizes so the HBM-bound x / y
    streams carry no padding bytes.  Weights are cast to `compute_dtype`
    (bf16 by default: bf16 MXU operands with f32 accumulation); biases stay
    f32 (added after the f32-accumulated matmul).

    Returns (padded_params, out_dim)."""
    w1, b1 = params["w1"], params["b1"]
    w2, b2 = params["w2"], params["b2"]
    w3, b3 = params["w3"], params["b3"]
    in_dim, h1 = w1.shape
    h2 = w2.shape[1]
    out_dim = w3.shape[1]
    h1_p = _round_up(h1, _LANE)
    h2_p = _round_up(h2, _LANE)

    def pad2(a, rows, cols):
        return jnp.pad(a, ((0, rows - a.shape[0]), (0, cols - a.shape[1])))

    padded = {
        "w1": pad2(w1, in_dim, h1_p).astype(compute_dtype),
        "b1": pad2(b1, 1, h1_p).astype(jnp.float32),
        "w2": pad2(w2, h1_p, h2_p).astype(compute_dtype),
        "b2": pad2(b2, 1, h2_p).astype(jnp.float32),
        "w3": pad2(w3, h2_p, out_dim).astype(compute_dtype),
        "b3": pad2(b3, 1, out_dim).astype(jnp.float32),
    }
    return padded, out_dim


def mlp_forward(x, padded_params, out_dim=None, *, reshape_3d=False,
                batch_tile=None, core_parallel=None):
    """Run the fused MLP forward pass.

    x:             (B, in_feat_dim), f32 or bf16 (bf16 halves the dominant
                   input stream; precision of the operand is reduced either
                   way once weights are bf16 since x is cast in-kernel).
    padded_params: output of pad_params_for_tpu.
    out_dim:       true output feature dim (defaults to w3.shape[1]).
    """
    w1, b1 = padded_params["w1"], padded_params["b1"]
    w2, b2 = padded_params["w2"], padded_params["b2"]
    w3, b3 = padded_params["w3"], padded_params["b3"]

    B, in_dim = x.shape
    assert in_dim == w1.shape[0], "x feature dim does not match w1"
    h1_p = w1.shape[1]
    h2_p = w2.shape[1]
    if out_dim is None:
        out_dim = w3.shape[1]
    assert out_dim == w3.shape[1]
    compute_dtype = w1.dtype

    if batch_tile is None:
        batch_tile = _default_batch_tile()
    if core_parallel is None:
        core_parallel = _default_core_parallel()

    # Batch tiling: keep the tile a multiple of 8 sublanes; no wrapper-side row
    # padding — the partial tail block is handled by Pallas (tail reads are
    # unspecified but rows are independent; OOB tail writes are dropped).
    bt = _round_up(min(batch_tile, _round_up(B, _SUBLANE)), _SUBLANE)
    if core_parallel and _round_up(B, _SUBLANE) >= 2 * _SUBLANE:
        # Ensure >= 2 grid steps so both v7x TensorCores get work.
        bt = min(bt, _round_up(pl.cdiv(_round_up(B, _SUBLANE), 2), _SUBLANE))
    grid = (pl.cdiv(B, bt),)

    # Explicit VMEM budget guard (v7x has only 64 MiB physical VMEM).
    w_itemsize = jnp.dtype(compute_dtype).itemsize
    weight_bytes = (in_dim * h1_p + h1_p * h2_p + h2_p * out_dim) * w_itemsize
    bias_bytes = (h1_p + h2_p + out_dim) * 4
    stream_bytes = bt * in_dim * x.dtype.itemsize + bt * out_dim * 4
    vmem_estimate = 2 * (weight_bytes + bias_bytes + stream_bytes)  # double-buffered
    if vmem_estimate > _VMEM_BUDGET_BYTES:
        raise ValueError(
            f"Resident MLP weights/streams (~{vmem_estimate / 2**20:.1f} MiB "
            "double-buffered) exceed the v7x-safe VMEM budget. Tile the hidden "
            "dims with a reduction grid axis marked 'arbitrary', single-buffer "
            "the constant weight specs (pipeline_mode=pl.Buffered(1)) and set "
            "vmem_limit_bytes explicitly.")

    # Honest (unpadded-stream) cost hint for XLA's scheduler.
    flops = 2 * B * (in_dim * h1_p + h1_p * h2_p + h2_p * out_dim)
    bytes_accessed = (B * in_dim * x.dtype.itemsize
                      + weight_bytes + bias_bytes
                      + B * out_dim * 4)

    dim_sem = (pltpu.CORE_PARALLEL,) if core_parallel else (pltpu.PARALLEL,)

    # x / out are tiled along the batch axis at their TRUE feature widths
    # (block last dim == full array dim is legal even when < 128); weights and
    # biases are whole-array VMEM-resident blocks with constant index_map.
    out = pl.pallas_call(
        _mlp_kernel,
        out_shape=jax.ShapeDtypeStruct((B, out_dim), jnp.float32),
        grid_spec=pltpu.PrefetchScalarGridSpec(
            num_scalar_prefetch=0,
            grid=grid,
            in_specs=[
                pl.BlockSpec((bt, in_dim), lambda i: (i, 0)),
                pl.BlockSpec((in_dim, h1_p), lambda i: (0, 0)),
                pl.BlockSpec((1, h1_p), lambda i: (0, 0)),
                pl.BlockSpec((h1_p, h2_p), lambda i: (0, 0)),
                pl.BlockSpec((1, h2_p), lambda i: (0, 0)),
                pl.BlockSpec((h2_p, out_dim), lambda i: (0, 0)),
                pl.BlockSpec((1, out_dim), lambda i: (0, 0)),
            ],
            out_specs=pl.BlockSpec((bt, out_dim), lambda i: (i, 0)),
        ),
        compiler_params=pltpu.CompilerParams(dimension_semantics=dim_sem),
        cost_estimate=pl.CostEstimate(
            flops=flops, transcendentals=0, bytes_accessed=bytes_accessed),
    )(x, w1, b1, w2, b2, w3, b3)

    if reshape_3d:
        return out.reshape(B, -1, 3)
    return out


def init_mlp_params(key, in_feat_dim, out_channels):
    """Deterministic init mimicking nn.Linear's U(-1/sqrt(fan_in), 1/sqrt(fan_in)).

    Weights are stored pre-transposed as (in_dim, out_dim); biases as (1, out_dim)."""
    c_dims = [in_feat_dim] + list(out_channels)
    params = {}
    names = ["1", "2", "3"]
    assert len(out_channels) == 3, "script configured for 2 hidden layers + output"
    for idx, name in enumerate(names):
        fan_in, fan_out = c_dims[idx], c_dims[idx + 1]
        key, kw, kb = jax.random.split(key, 3)
        bound = 1.0 / math.sqrt(fan_in)
        params[f"w{name}"] = jax.random.uniform(
            kw, (fan_in, fan_out), jnp.float32, -bound, bound)
        params[f"b{name}"] = jax.random.uniform(
            kb, (1, fan_out), jnp.float32, -bound, bound)
    return params


def mlp_reference(x, params):
    """Plain-JAX reference of the same forward pass for a correctness check."""
    h = jnp.maximum(x @ params["w1"] + params["b1"], 0.0)
    h = jnp.maximum(h @ params["w2"] + params["b2"], 0.0)
    return h @ params["w3"] + params["b3"]


if __name__ == "__main__":
    # Small HW4-style config: MLP(in_feat_dim=32, out_channels=[64, 64, 48])
    B = 8
    in_feat_dim = 32
    out_channels = [64, 64, 48]  # 48 = 16 points * 3 coords (reshape_3d compatible)

    key = jax.random.PRNGKey(0)
    key, kx = jax.random.split(key)
    x = jax.random.normal(kx, (B, in_feat_dim), jnp.float32)

    params = init_mlp_params(key, in_feat_dim, out_channels)
    y_ref = mlp_reference(x, params)

    # f32 operands: bit-tight parity with the reference.
    pparams_f32, out_dim = pad_params_for_tpu(params, compute_dtype=jnp.float32)
    y = jax.block_until_ready(mlp_forward(x, pparams_f32, out_dim))
    assert y.shape == (B, out_channels[-1])
    assert jnp.allclose(y, y_ref, atol=1e-5, rtol=1e-5), "f32 mismatch vs reference"

    # Default path: bf16 MXU operands (weights; x cast in-kernel), f32 accumulation.
    pparams_bf16, _ = pad_params_for_tpu(params)
    y_bf16 = jax.block_until_ready(mlp_forward(x, pparams_bf16, out_dim))
    assert y_bf16.shape == (B, out_channels[-1])
    assert jnp.allclose(y_bf16, y_ref, atol=1e-1, rtol=0.0), "bf16 path diverged"

    # bf16 x in HBM (halves the dominant input stream) — operand precision is
    # reduced on purpose; loose tolerance.
    y_bf16x = jax.block_until_ready(
        mlp_forward(x.astype(jnp.bfloat16), pparams_bf16, out_dim))
    assert jnp.allclose(y_bf16x, y_ref, atol=1e-1, rtol=0.0), "bf16-x path diverged"

    # reshape_3d path (glue-level view, as in the PyTorch module)
    y3d = jax.block_until_ready(mlp_forward(x, pparams_f32, out_dim, reshape_3d=True))
    assert y3d.shape == (B, out_channels[-1] // 3, 3)

    # Non-divisible batch exercised through the partial tail-block path (no padding).
    xb = jax.random.normal(jax.random.PRNGKey(1), (37, in_feat_dim), jnp.float32)
    yb = jax.block_until_ready(mlp_forward(xb, pparams_f32, out_dim))
    assert yb.shape == (37, out_channels[-1])
    assert jnp.allclose(yb, mlp_reference(xb, params), atol=1e-5, rtol=1e-5)

    # Multi-step grid (B > batch_tile) + tail.
    xc = jax.random.normal(jax.random.PRNGKey(2), (300, in_feat_dim), jnp.float32)
    yc = jax.block_until_ready(mlp_forward(xc, pparams_f32, out_dim, batch_tile=128))
    assert yc.shape == (300, out_channels[-1])
    assert jnp.allclose(yc, mlp_reference(xc, params), atol=1e-5, rtol=1e-5)

    # TODO(synk): l1_loss() is a parameter-norm utility, not part of the forward
    # hot path; it is left to plain JAX (sum of |params|) if needed.

    print("KERNEL_OK")
</pallas_src>

<mosaic_0001>
module attributes {stable_mosaic.version = 11 : i64} {
  func.func @_mlp_kernel(%arg0: i32, %arg1: memref<8x32xf32, #tpu.memory_space<vmem>>, %arg2: memref<32x128xf32, #tpu.memory_space<vmem>>, %arg3: memref<1x128xf32, #tpu.memory_space<vmem>>, %arg4: memref<128x128xf32, #tpu.memory_space<vmem>>, %arg5: memref<1x128xf32, #tpu.memory_space<vmem>>, %arg6: memref<128x48xf32, #tpu.memory_space<vmem>>, %arg7: memref<1x48xf32, #tpu.memory_space<vmem>>, %arg8: memref<8x48xf32, #tpu.memory_space<vmem>>) attributes {dimension_semantics = [#tpu.dimension_semantics<parallel>], iteration_bounds = array<i64: 1>, scalar_prefetch = 0 : i64, scratch_operands = 0 : i64, tpu.core_type = #tpu.core_type<tc>, window_params = [{transform_indices = @transform_0, window_bounds = array<i64: 8, 32>}, {pipeline_mode = #tpu.pipeline_mode<synchronous>, transform_indices = @transform_1, window_bounds = array<i64: 32, 128>}, {pipeline_mode = #tpu.pipeline_mode<synchronous>, transform_indices = @transform_2, window_bounds = array<i64: 1, 128>}, {pipeline_mode = #tpu.pipeline_mode<synchronous>, transform_indices = @transform_3, window_bounds = array<i64: 128, 128>}, {pipeline_mode = #tpu.pipeline_mode<synchronous>, transform_indices = @transform_4, window_bounds = array<i64: 1, 128>}, {pipeline_mode = #tpu.pipeline_mode<synchronous>, transform_indices = @transform_5, window_bounds = array<i64: 128, 48>}, {pipeline_mode = #tpu.pipeline_mode<synchronous>, transform_indices = @transform_6, window_bounds = array<i64: 1, 48>}, {transform_indices = @transform_7, window_bounds = array<i64: 8, 48>}]} {
    %c0 = arith.constant 0 : index
    %c0_0 = arith.constant 0 : index
    %0 = vector.load %arg1[%c0, %c0_0] : memref<8x32xf32, #tpu.memory_space<vmem>>, vector<8x32xf32>
    %c0_1 = arith.constant 0 : index
    %c0_2 = arith.constant 0 : index
    %1 = vector.load %arg2[%c0_1, %c0_2] : memref<32x128xf32, #tpu.memory_space<vmem>>, vector<32x128xf32>
    %cst = arith.constant dense<0.000000e+00> : vector<8x128xf32>
    %2 = tpu.matmul %0, %1, %cst {dimension_numbers = #tpu.dot_dimension_numbers<[1], [0], [0], [1], [0, 0, 1, 1], [], []>} : vector<8x32xf32>, vector<32x128xf32>, vector<8x128xf32> -> vector<8x128xf32>
    %c0_3 = arith.constant 0 : index
    %c0_4 = arith.constant 0 : index
    %3 = vector.load %arg3[%c0_3, %c0_4] : memref<1x128xf32, #tpu.memory_space<vmem>>, vector<1x128xf32>
    %4 = vector.broadcast %3 : vector<1x128xf32> to vector<8x128xf32>
    %5 = arith.addf %2, %4 : vector<8x128xf32>
    %cst_5 = arith.constant 0.000000e+00 : f32
    %6 = vector.broadcast %cst_5 : f32 to vector<8x128xf32>
    %7 = arith.maximumf %5, %6 : vector<8x128xf32>
    %c0_6 = arith.constant 0 : index
    %c0_7 = arith.constant 0 : index
    %8 = vector.load %arg4[%c0_6, %c0_7] : memref<128x128xf32, #tpu.memory_space<vmem>>, vector<128x128xf32>
    %cst_8 = arith.constant dense<0.000000e+00> : vector<8x128xf32>
    %9 = tpu.matmul %7, %8, %cst_8 {dimension_numbers = #tpu.dot_dimension_numbers<[1], [0], [0], [1], [0, 0, 1, 1], [], []>} : vector<8x128xf32>, vector<128x128xf32>, vector<8x128xf32> -> vector<8x128xf32>
    %c0_9 = arith.constant 0 : index
    %c0_10 = arith.constant 0 : index
    %10 = vector.load %arg5[%c0_9, %c0_10] : memref<1x128xf32, #tpu.memory_space<vmem>>, vector<1x128xf32>
    %11 = vector.broadcast %10 : vector<1x128xf32> to vector<8x128xf32>
    %12 = arith.addf %9, %11 : vector<8x128xf32>
    %cst_11 = arith.constant 0.000000e+00 : f32
    %13 = vector.broadcast %cst_11 : f32 to vector<8x128xf32>
    %14 = arith.maximumf %12, %13 : vector<8x128xf32>
    %c0_12 = arith.constant 0 : index
    %c0_13 = arith.constant 0 : index
    %15 = vector.load %arg6[%c0_12, %c0_13] : memref<128x48xf32, #tpu.memory_space<vmem>>, vector<128x48xf32>
    %cst_14 = arith.constant dense<0.000000e+00> : vector<8x48xf32>
    %16 = tpu.matmul %14, %15, %cst_14 {dimension_numbers = #tpu.dot_dimension_numbers<[1], [0], [0], [1], [0, 0, 1, 1], [], []>} : vector<8x128xf32>, vector<128x48xf32>, vector<8x48xf32> -> vector<8x48xf32>
    %c0_15 = arith.constant 0 : index
    %c0_16 = arith.constant 0 : index
    %17 = vector.load %arg7[%c0_15, %c0_16] : memref<1x48xf32, #tpu.memory_space<vmem>>, vector<1x48xf32>
    %18 = vector.broadcast %17 : vector<1x48xf32> to vector<8x48xf32>
    %19 = arith.addf %16, %18 : vector<8x48xf32>
    %c0_17 = arith.constant 0 : index
    %c0_18 = arith.constant 0 : index
    %20 = vector.load %arg8[%c0_17, %c0_18] : memref<8x48xf32, #tpu.memory_space<vmem>>, vector<8x48xf32>
    tpu.vector_store %arg8[%c0_17, %c0_18], %19 {strides = array<i32>} : memref<8x48xf32, #tpu.memory_space<vmem>>, vector<8x48xf32>,
    return
  }
  func.func @transform_0(%arg0: i32) -> (i32, i32) {
    %c0_i32 = arith.constant 0 : i32
    %c0_i32_0 = arith.constant 0 : i32
    return %arg0, %c0_i32 : i32, i32
  }
  func.func @transform_1(%arg0: i32) -> (i32, i32) {
    %c0_i32 = arith.constant 0 : i32
    %c0_i32_0 = arith.constant 0 : i32
    %c0_i32_1 = arith.constant 0 : i32
    return %c0_i32, %c0_i32_0 : i32, i32
  }
  func.func @transform_2(%arg0: i32) -> (i32, i32) {
    %c0_i32 = arith.constant 0 : i32
    %c0_i32_0 = arith.constant 0 : i32
    %c0_i32_1 = arith.constant 0 : i32
    return %c0_i32, %c0_i32_0 : i32, i32
  }
  func.func @transform_3(%arg0: i32) -> (i32, i32) {
    %c0_i32 = arith.constant 0 : i32
    %c0_i32_0 = arith.constant 0 : i32
    %c0_i32_1 = arith.constant 0 : i32
    return %c0_i32, %c0_i32_0 : i32, i32
  }
  func.func @transform_4(%arg0: i32) -> (i32, i32) {
    %c0_i32 = arith.constant 0 : i32
    %c0_i32_0 = arith.constant 0 : i32
    %c0_i32_1 = arith.constant 0 : i32
    return %c0_i32, %c0_i32_0 : i32, i32
  }
  func.func @transform_5(%arg0: i32) -> (i32, i32) {
    %c0_i32 = arith.constant 0 : i32
    %c0_i32_0 = arith.constant 0 : i32
    %c0_i32_1 = arith.constant 0 : i32
    return %c0_i32, %c0_i32_0 : i32, i32
  }
  func.func @transform_6(%arg0: i32) -> (i32, i32) {
    %c0_i32 = arith.constant 0 : i32
    %c0_i32_0 = arith.constant 0 : i32
    %c0_i32_1 = arith.constant 0 : i32
    return %c0_i32, %c0_i32_0 : i32, i32
  }
  func.func @transform_7(%arg0: i32) -> (i32, i32) {
    %c0_i32 = arith.constant 0 : i32
    %c0_i32_0 = arith.constant 0 : i32
    return %arg0, %c0_i32 : i32, i32
  }
}

</mosaic_0001>

<llo_original>
// kernel: tpu_custom_call.1
$region0: #{tpu_custom_call.1}
  #allocation0 [shape = 'u32[]', space=smem, size = 0x4, offset = 0x4, fixed_abs, tag = 'smem constant byte address 0x4 - core index']
  #allocation1 [shape = 'u32[72,128]{1,0:T(1,128)}', space=vmem, size = 0x9000, scoped, tag = 'internal scratch']
  %s0 = inlined_call_operand.vmem [shape: f32[8,32], index: 0, kind: input, shape index: {}]
  %s1 = inlined_call_operand.vmem [shape: f32[32,128], index: 1, kind: input, shape index: {}]
  %s2 = inlined_call_operand.vmem [shape: f32[1,128], index: 2, kind: input, shape index: {}]
  %s3 = inlined_call_operand.vmem [shape: f32[128,128], index: 3, kind: input, shape index: {}]
  %s4 = inlined_call_operand.vmem [shape: f32[1,128], index: 4, kind: input, shape index: {}]
  %s5 = inlined_call_operand.vmem [shape: f32[128,48], index: 5, kind: input, shape index: {}]
  %s6 = inlined_call_operand.vmem [shape: f32[1,48], index: 6, kind: input, shape index: {}]
  %s7 = inlined_call_operand.hbm [shape: f32[8,48], index: 7, kind: output, shape index: {}]
  %s8 = sld [smem:[#allocation0]]
  $region38: #{tpu_custom_call.1} parent=0
    _
  %s10 = ssub.s32 1, %s8
  %s11 = scalar_select 0, %s10, %s8
  $region1: #{tpu_custom_call.1} parent=0
    #allocation2 [shape = 'u8[4096]{0}', space=vmem, size = 0x1000, scoped, tag = 'output window, operand 0, single buffered']
    #allocation3 [shape = 's32[1]{0}', space=sflag, size = 0x4, scoped, tag = 'scoped memory for tpu_custom_call.1']
    %12 = vsyncpa [#allocation3], 0
    // Predicated region
    $region2: #{tpu_custom_call.1} parent=1 // pred_check
      _
    $region3: #{tpu_custom_call.1} parent=1 // pred_check_branch
      %14 = sbr.rel (0) target = $region5
    $region4: #{tpu_custom_call.1} parent=1 // pred_region
      _
    $region5: #{tpu_custom_call.1} parent=1 // pred_fallthru
      _
    // Predicated region
    $region6: #{tpu_custom_call.1} parent=1 // pred_check
      _
    $region7: #{tpu_custom_call.1} parent=1 // pred_check_branch
      %16 = sbr.rel (0) target = $region9
    $region8: #{tpu_custom_call.1} parent=1 // pred_region
      _
    $region9: #{tpu_custom_call.1} parent=1 // pred_fallthru
      _
    // Predicated region
    $region10: #{tpu_custom_call.1} parent=1 // pred_check
      _
    $region11: #{tpu_custom_call.1} parent=1 // pred_check_branch
      %18 = sbr.rel (0) target = $region13
    $region12: #{tpu_custom_call.1} parent=1 // pred_region
      _
    $region13: #{tpu_custom_call.1} parent=1 // pred_fallthru
      _
    // Predicated region
    $region14: #{tpu_custom_call.1} parent=1 // pred_check
      _
    $region15: #{tpu_custom_call.1} parent=1 // pred_check_branch
      %20 = sbr.rel (0) target = $region17
    $region16: #{tpu_custom_call.1} parent=1 // pred_region
      _
    $region17: #{tpu_custom_call.1} parent=1 // pred_fallthru
      _
    // Predicated region
    $region18: #{tpu_custom_call.1} parent=1 // pred_check
      _
    $region19: #{tpu_custom_call.1} parent=1 // pred_check_branch
      %22 = sbr.rel (0) target = $region21
    $region20: #{tpu_custom_call.1} parent=1 // pred_region
      _
    $region21: #{tpu_custom_call.1} parent=1 // pred_fallthru
      _
    // Predicated region
    $region22: #{tpu_custom_call.1} parent=1 // pred_check
      _
    $region23: #{tpu_custom_call.1} parent=1 // pred_check_branch
      %24 = sbr.rel (0) target = $region25
    $region24: #{tpu_custom_call.1} parent=1 // pred_region
      _
    $region25: #{tpu_custom_call.1} parent=1 // pred_fallthru
      _
    // Predicated region
    $region26: #{tpu_custom_call.1} parent=1 // pred_check
      _
    $region27: #{tpu_custom_call.1} parent=1 // pred_check_branch
      %26 = sbr.rel (0) target = $region29
    $region28: #{tpu_custom_call.1} parent=1 // pred_region
      _
    $region29: #{tpu_custom_call.1} parent=1 // pred_fallthru
      _
    %v27 = vld [vmem:[%s0] sm:$0xff]
    %v28 = vld [vmem:[%s1] sm:$0xff]
    %v29 = vld [vmem:[%s1 + $0x8] sm:$0xff]
    %v30 = vld [vmem:[%s1 + $0x10] sm:$0xff]
    %v31 = vld [vmem:[%s1 + $0x18] sm:$0xff]
    %v32 = vld [vmem:[%s2] sm:$0x1]
    %v34 = vperm.slane %v32, 0
    %vm36 = vcmask 261120
    %v38 = vsel %vm36, %v27, 0
    %40 = vmatpush.msra.mxu0 0.0
    %41 = vmatpush.msra.mxu0 0.0
    %42 = vmatpush.msra.mxu0 0.0
    %43 = vmatpush.msra.mxu0 0.0
    %44 = vmatpush.msra.mxu0 0.0
    %45 = vmatpush.msra.mxu0 0.0
    %46 = vmatpush.msra.mxu0 0.0
    %47 = vmatpush.msra.mxu0 0.0
    %48 = vmatpush.msra.mxu0 0.0
    %49 = vmatpush.msra.mxu0 0.0
    %50 = vmatpush.msra.mxu0 0.0
    %51 = vmatpush.msra.mxu0 0.0
    %52 = vmatpush.msra.mxu0 %v31
    %53 = vmatpush.msra.mxu0 %v30
    %54 = vmatpush.msra.mxu0 %v29
    %55 = vmatpush.msra.mxu0 %v28
    %56 = vmatmul.f32.gmra.mxu0 %v38
    %v57 = vpop.f32.mrf.mxu0
    %v58 = vadd.f32 %v34, %v57
    %59 = vdwg.mxu0
    %v60 = vmax.f32 %v58, 0.0
    %v61 = vld [vmem:[%s3] sm:$0xff]
    %v62 = vld [vmem:[%s3 + $0x8] sm:$0xff]
    %v63 = vld [vmem:[%s3 + $0x10] sm:$0xff]
    %v64 = vld [vmem:[%s3 + $0x18] sm:$0xff]
    %v65 = vld [vmem:[%s3 + $0x20] sm:$0xff]
    %v66 = vld [vmem:[%s3 + $0x28] sm:$0xff]
    %v67 = vld [vmem:[%s3 + $0x30] sm:$0xff]
    %v68 = vld [vmem:[%s3 + $0x38] sm:$0xff]
    %v69 = vld [vmem:[%s3 + $0x40] sm:$0xff]
    %v70 = vld [vmem:[%s3 + $0x48] sm:$0xff]
    %v71 = vld [vmem:[%s3 + $0x50] sm:$0xff]
    %v72 = vld [vmem:[%s3 + $0x58] sm:$0xff]
    %v73 = vld [vmem:[%s3 + $0x60] sm:$0xff]
    %v74 = vld [vmem:[%s3 + $0x68] sm:$0xff]
    %v75 = vld [vmem:[%s3 + $0x70] sm:$0xff]
    %v76 = vld [vmem:[%s3 + $0x78] sm:$0xff]
    %v77 = vld [vmem:[%s4] sm:$0x1]
    %v79 = vperm.slane %v77, 0
    %81 = vmatpush.msra.mxu0 %v76
    %82 = vmatpush.msra.mxu0 %v75
    %83 = vmatpush.msra.mxu0 %v74
    %84 = vmatpush.msra.mxu0 %v73
    %85 = vmatpush.msra.mxu0 %v72
    %86 = vmatpush.msra.mxu0 %v71
    %87 = vmatpush.msra.mxu0 %v70
    %88 = vmatpush.msra.mxu0 %v69
    %89 = vmatpush.msra.mxu0 %v68
    %90 = vmatpush.msra.mxu0 %v67
    %91 = vmatpush.msra.mxu0 %v66
    %92 = vmatpush.msra.mxu0 %v65
    %93 = vmatpush.msra.mxu0 %v64
    %94 = vmatpush.msra.mxu0 %v63
    %95 = vmatpush.msra.mxu0 %v62
    %96 = vmatpush.msra.mxu0 %v61
    %97 = vmatmul.f32.gmra.mxu0 %v60
    %v98 = vpop.f32.mrf.mxu0
    %v99 = vadd.f32 %v79, %v98
    %100 = vdwg.mxu0
    %v101 = vmax.f32 %v99, 0.0
    %v102 = vld [vmem:[%s5] sm:$0xff]
    %v103 = vld [vmem:[%s5 + $0x8] sm:$0xff]
    %v104 = vld [vmem:[%s5 + $0x10] sm:$0xff]
    %v105 = vld [vmem:[%s5 + $0x18] sm:$0xff]
    %v106 = vld [vmem:[%s5 + $0x20] sm:$0xff]
    %v107 = vld [vmem:[%s5 + $0x28] sm:$0xff]
    %v108 = vld [vmem:[%s5 + $0x30] sm:$0xff]
    %v109 = vld [vmem:[%s5 + $0x38] sm:$0xff]
    %v110 = vld [vmem:[%s5 + $0x40] sm:$0xff]
    %v111 = vld [vmem:[%s5 + $0x48] sm:$0xff]
    %v112 = vld [vmem:[%s5 + $0x50] sm:$0xff]
    %v113 = vld [vmem:[%s5 + $0x58] sm:$0xff]
    %v114 = vld [vmem:[%s5 + $0x60] sm:$0xff]
    %v115 = vld [vmem:[%s5 + $0x68] sm:$0xff]
    %v116 = vld [vmem:[%s5 + $0x70] sm:$0xff]
    %v117 = vld [vmem:[%s5 + $0x78] sm:$0xff]
    %v118 = vld [vmem:[%s6] sm:$0x1]
    %v120 = vperm.slane %v118, 0
    %122 = vmatpush.msra.mxu0 %v117
    %123 = vmatpush.msra.mxu0 %v116
    %124 = vmatpush.msra.mxu0 %v115
    %125 = vmatpush.msra.mxu0 %v114
    %126 = vmatpush.msra.mxu0 %v113
    %127 = vmatpush.msra.mxu0 %v112
    %128 = vmatpush.msra.mxu0 %v111
    %129 = vmatpush.msra.mxu0 %v110
    %130 = vmatpush.msra.mxu0 %v109
    %131 = vmatpush.msra.mxu0 %v108
    %132 = vmatpush.msra.mxu0 %v107
    %133 = vmatpush.msra.mxu0 %v106
    %134 = vmatpush.msra.mxu0 %v105
    %135 = vmatpush.msra.mxu0 %v104
    %136 = vmatpush.msra.mxu0 %v103
    %137 = vmatpush.msra.mxu0 %v102
    %138 = vmatmul.f32.gmra.mxu0 %v101
    %v139 = vpop.f32.mrf.mxu0
    %v140 = vadd.f32 %v120, %v139
    %141 = vdwg.mxu0
    %vm142 = vcmask 392192
    %143 = vst.msk [vmem:[#allocation2] sm:$0xff] %vm142, %v140
    // Predicated region
    $region30: #{tpu_custom_call.1} parent=1 // pred_check
      _
    $region31: #{tpu_custom_call.1} parent=1 // pred_check_branch
      %145 = sbr.rel (0) target = $region33
    $region32: #{tpu_custom_call.1} parent=1 // pred_region
      %147 = vsyncadd [#allocation3], 0
      %s149 = sshll.u32 [#allocation2], 4
      %s150 = int_to_ptr.vmem [resolvable:$true] %s149
      %s151 = sshll.u32 %s7, 4
      %s152 = int_to_ptr.hbm [resolvable:$true] %s151
      %154 = dma.vmem_to_hbm [thread:$0]  %s150, 128, %s152, [#allocation3]
    $region33: #{tpu_custom_call.1} parent=1 // pred_fallthru
      _
    // Predicated region
    $region34: #{tpu_custom_call.1} parent=1 // pred_check
      _
    $region35: #{tpu_custom_call.1} parent=1 // pred_check_branch
      %156 = sbr.rel (0) target = $region37
    $region36: #{tpu_custom_call.1} parent=1 // pred_region
      %158 = dma.done [#allocation3], 128
    $region37: #{tpu_custom_call.1} parent=1 // pred_fallthru
      _
    %159 = vsyncpa [#allocation3], 1

</llo_original>
